<compile_context>
chip_gen: v6e
topology: v6e:2x2x1
jax: 0.10.0
libtpu: 0.0.40
codegen_flags: <defaults>
</compile_context>

<pallas_src>
import jax
import jax.numpy as jnp
from jax.experimental import pallas as pl
from jax.experimental.pallas import tpu as pltpu

BN_EPS = 1e-5


def _round_up(x, m):
    return ((x + m - 1) // m) * m


def _ceil_div(a, b):
    return -(-a // b)


# ---------------------------------------------------------------------------
# Single fused kernel: o[b] = W2 @ relu(W1_eff @ x[b] + shift) + b2
# ---------------------------------------------------------------------------
def _apply_kernel(x_ref, w1_ref, shift_ref, w2_ref, b2_ref, o_ref):
    # x_ref:     (nb, Cin, tn) f32   points block, channel-major
    # w1_ref:    (F, Cin)      f32   gamma*rsqrt(var+eps) pre-folded
    # shift_ref: (F, 1)        f32   folded BN shift (includes conv1 bias)
    # w2_ref:    (F, F)        bf16 (or f32) second 1x1 conv weight
    # b2_ref:    (F, 1)        f32
    # o_ref:     (nb, F, tn)         lane-dense output, already (B, F, N) layout
    w1 = w1_ref[...]
    shift = shift_ref[...]
    w2 = w2_ref[...]
    b2 = b2_ref[...]
    nb, cin, _ = x_ref.shape
    for b in range(nb):                          # small static unroll (nb <= 8)
        x = x_ref[b]                             # (Cin, tn)
        # K=Cin(=3) matmul as broadcast FMAs on the VPU (keeps the MXU free).
        z = w1[:, 0:1] * x[0:1, :]
        for c in range(1, cin):
            z = z + w1[:, c:c + 1] * x[c:c + 1, :]
        g = jnp.maximum(z + shift, 0.0)          # BN affine + ReLU, (F, tn) f32
        # (F,F)@(F,tn) on the MXU, bf16 operands / f32 accumulation.
        o = jnp.dot(w2, g.astype(w2.dtype), preferred_element_type=jnp.float32)
        o_ref[b] = (o + b2).astype(o_ref.dtype)


def position_embedding_learned(xyz, params, *, tile_n=8192, max_batch_block=8,
                               matmul_dtype=jnp.bfloat16, out_dtype=jnp.float32):
    """xyz: (B, N, Cin) -> (B, F, N), matching the PyTorch module in .train() mode."""
    B, N, Cin = xyz.shape
    w1 = params["w1"].astype(jnp.float32)
    b1 = params.get("b1")
    b1 = jnp.zeros((w1.shape[0],), jnp.float32) if b1 is None else b1.astype(jnp.float32)
    gamma = params["gamma"].astype(jnp.float32)
    beta = params["beta"].astype(jnp.float32)
    w2 = params["w2"].astype(jnp.float32)
    b2 = params["b2"].astype(jnp.float32)
    F_ = w1.shape[0]

    x32 = xyz.astype(jnp.float32)

    # ---- BN batch stats from x moments (training mode, biased variance), in XLA ----
    # Only the (Cin,) mean and centered (Cin,Cin) covariance of the points are needed
    # (tiny reductions that XLA fuses with the input read).
    hp = jax.lax.Precision.HIGHEST
    count = jnp.float32(B * N)
    x_flat = x32.reshape(B * N, Cin)
    mean_x = jnp.mean(x_flat, axis=0)                                    # (Cin,)
    xc = x_flat - mean_x
    cov_x = jnp.einsum("pc,pd->cd", xc, xc, precision=hp) / count        # (Cin,Cin)
    mean_z = w1 @ mean_x + b1                                            # (F,)
    var_z = jnp.maximum(
        jnp.einsum("fc,cd,fd->f", w1, cov_x, w1, precision=hp), 0.0)     # (F,) biased
    inv = gamma * jax.lax.rsqrt(var_z + BN_EPS)                          # (F,)
    w1_eff = w1 * inv[:, None]                                           # (F, Cin)
    shift = (beta + inv * (b1 - mean_z))[:, None]                        # (F, 1)
    b2_col = b2[:, None]                                                 # (F, 1)

    # ---- channel-major layout for the kernel: (B, Cin, N) ----
    # TODO(synk): if the producer can hand over channel-major (B, Cin, N), drop this.
    x_t = jnp.transpose(x32, (0, 2, 1))

    # ---- point-axis tiling: big tiles, padding bounded by < 128 lanes per tile ----
    n_lanes = _round_up(N, 128)
    n_tiles = max(1, _ceil_div(n_lanes, max(tile_n, 128)))
    tn = _round_up(_ceil_div(n_lanes, n_tiles), 128)
    n_pad = tn * n_tiles
    if n_pad != N:
        x_t = jnp.pad(x_t, ((0, 0), (0, 0), (0, n_pad - N)))

    # ---- batch blocking: keep every grid step moving ~tile_n points ----
    nb_cap = max(1, min(max_batch_block, max(tile_n, 128) // tn))
    nb = 1
    for d in range(1, min(B, nb_cap) + 1):
        if B % d == 0:
            nb = d
    grid = (B // nb, n_tiles)

    x_spec = pl.BlockSpec((nb, Cin, tn), lambda b, t: (b, 0, t))
    w1_spec = pl.BlockSpec((F_, Cin), lambda b, t: (0, 0))               # resident params
    col_spec = pl.BlockSpec((F_, 1), lambda b, t: (0, 0))
    w2_spec = pl.BlockSpec((F_, F_), lambda b, t: (0, 0))
    out_spec = pl.BlockSpec((nb, F_, tn), lambda b, t: (b, 0, t))

    out_pad = pl.pallas_call(
        _apply_kernel,
        grid=grid,
        in_specs=[x_spec, w1_spec, col_spec, w2_spec, col_spec],
        out_specs=out_spec,
        out_shape=jax.ShapeDtypeStruct((B, F_, n_pad), out_dtype),
        compiler_params=pltpu.CompilerParams(
            dimension_semantics=("parallel", "parallel")),
    )(x_t, w1_eff, shift, w2.astype(matmul_dtype), b2_col)

    return out_pad if n_pad == N else out_pad[:, :, :N]                  # (B, F, N)


def init_params(key, input_channel=3, num_pos_feats=32):
    """Deterministic init mirroring the PyTorch __init__:
       Conv1d weights: kaiming_normal_(mode='fan_in') -> std = sqrt(2/fan_in)
       Conv1d biases:  zeros
       BN weight:      uniform [0,1),  BN bias: zeros
    """
    k1, k2, k3 = jax.random.split(key, 3)
    Cin, F_ = input_channel, num_pos_feats
    w1 = jax.random.normal(k1, (F_, Cin), jnp.float32) * jnp.sqrt(2.0 / Cin)
    b1 = jnp.zeros((F_,), jnp.float32)
    gamma = jax.random.uniform(k3, (F_,), jnp.float32)
    beta = jnp.zeros((F_,), jnp.float32)
    w2 = jax.random.normal(k2, (F_, F_), jnp.float32) * jnp.sqrt(2.0 / F_)
    b2 = jnp.zeros((F_,), jnp.float32)
    return {"w1": w1, "b1": b1, "gamma": gamma, "beta": beta, "w2": w2, "b2": b2}


def _reference(xyz, params):
    """Pure-JAX reference of the PyTorch forward (training-mode BN), full f32."""
    hp = jax.lax.Precision.HIGHEST
    x = jnp.transpose(xyz, (0, 2, 1))                                    # (B, Cin, N)
    h = jnp.einsum("fc,bcn->bfn", params["w1"], x, precision=hp)
    h = h + params["b1"][None, :, None]
    mean = jnp.mean(h, axis=(0, 2), keepdims=True)
    var = jnp.mean((h - mean) ** 2, axis=(0, 2), keepdims=True)          # biased
    h = (h - mean) * jax.lax.rsqrt(var + BN_EPS)
    h = h * params["gamma"][None, :, None] + params["beta"][None, :, None]
    h = jnp.maximum(h, 0.0)
    out = jnp.einsum("fg,bgn->bfn", params["w2"], h, precision=hp)
    return out + params["b2"][None, :, None]


if __name__ == "__main__":
    key = jax.random.PRNGKey(0)
    kx, kp, kx2 = jax.random.split(key, 3)

    # Small shapes consistent with the module: (B, N, Cin) -> (B, F, N).
    B, N, Cin, F_ = 2, 16, 3, 32
    xyz = jax.random.normal(kx, (B, N, Cin), jnp.float32)
    params = init_params(kp, input_channel=Cin, num_pos_feats=F_)
    ref = _reference(xyz, params)

    # Default path (bf16 MXU operands, f32 accumulation).
    out = position_embedding_learned(xyz, params)
    jax.block_until_ready(out)
    assert out.shape == (B, F_, N), out.shape
    assert jnp.allclose(out, ref, atol=3e-2, rtol=3e-2), \
        float(jnp.max(jnp.abs(out - ref)))

    # Full-f32 matmul path: tight comparison against the pure-JAX reference.
    out32 = position_embedding_learned(xyz, params, matmul_dtype=jnp.float32)
    jax.block_until_ready(out32)
    assert jnp.allclose(out32, ref, atol=1e-3, rtol=1e-3), \
        float(jnp.max(jnp.abs(out32 - ref)))

    # Second config: odd N (padding path), B=3 (batch blocking), large coordinate
    # offset (exercises the centered-covariance BN statistics).
    B2, N2 = 3, 300
    xyz2 = jax.random.normal(kx2, (B2, N2, Cin), jnp.float32) * 2.0 + 5.0
    ref2 = _reference(xyz2, params)
    out2 = position_embedding_learned(xyz2, params, matmul_dtype=jnp.float32)
    jax.block_until_ready(out2)
    assert out2.shape == (B2, F_, N2), out2.shape
    assert jnp.allclose(out2, ref2, atol=1e-3, rtol=1e-3), \
        float(jnp.max(jnp.abs(out2 - ref2)))

    print("KERNEL_OK")
</pallas_src>

<mosaic_0001>
module attributes {stable_mosaic.version = 11 : i64} {
  func.func @_apply_kernel(%arg0: i32, %arg1: i32, %arg2: memref<2x3x128xf32, #tpu.memory_space<vmem>>, %arg3: memref<32x3xf32, #tpu.memory_space<vmem>>, %arg4: memref<32x1xf32, #tpu.memory_space<vmem>>, %arg5: memref<32x32xbf16, #tpu.memory_space<vmem>>, %arg6: memref<32x1xf32, #tpu.memory_space<vmem>>, %arg7: memref<2x32x128xf32, #tpu.memory_space<vmem>>) attributes {dimension_semantics = [#tpu.dimension_semantics<parallel>, #tpu.dimension_semantics<parallel>], iteration_bounds = array<i64: 1, 1>, scalar_prefetch = 0 : i64, scratch_operands = 0 : i64, tpu.core_type = #tpu.core_type<tc>, window_params = [{transform_indices = @transform_0, window_bounds = array<i64: 2, 3, 128>}, {pipeline_mode = #tpu.pipeline_mode<synchronous>, transform_indices = @transform_1, window_bounds = array<i64: 32, 3>}, {pipeline_mode = #tpu.pipeline_mode<synchronous>, transform_indices = @transform_2, window_bounds = array<i64: 32, 1>}, {pipeline_mode = #tpu.pipeline_mode<synchronous>, transform_indices = @transform_3, window_bounds = array<i64: 32, 32>}, {pipeline_mode = #tpu.pipeline_mode<synchronous>, transform_indices = @transform_4, window_bounds = array<i64: 32, 1>}, {transform_indices = @transform_5, window_bounds = array<i64: 2, 32, 128>}]} {
    %c0 = arith.constant 0 : index
    %c0_0 = arith.constant 0 : index
    %0 = vector.load %arg3[%c0, %c0_0] : memref<32x3xf32, #tpu.memory_space<vmem>>, vector<32x3xf32>
    %c0_1 = arith.constant 0 : index
    %c0_2 = arith.constant 0 : index
    %1 = vector.load %arg4[%c0_1, %c0_2] : memref<32x1xf32, #tpu.memory_space<vmem>>, vector<32x1xf32>
    %c0_3 = arith.constant 0 : index
    %c0_4 = arith.constant 0 : index
    %2 = vector.load %arg5[%c0_3, %c0_4] : memref<32x32xbf16, #tpu.memory_space<vmem>>, vector<32x32xbf16>
    %c0_5 = arith.constant 0 : index
    %c0_6 = arith.constant 0 : index
    %3 = vector.load %arg6[%c0_5, %c0_6] : memref<32x1xf32, #tpu.memory_space<vmem>>, vector<32x1xf32>
    %c0_7 = arith.constant 0 : index
    %c0_8 = arith.constant 0 : index
    %c0_9 = arith.constant 0 : index
    %4 = vector.load %arg2[%c0_7, %c0_8, %c0_9] : memref<2x3x128xf32, #tpu.memory_space<vmem>>, vector<1x3x128xf32>
    %5 = vector.shape_cast %4 : vector<1x3x128xf32> to vector<3x128xf32>
    %6 = vector.extract_strided_slice %0 {offsets = [0, 0], sizes = [32, 1], strides = [1, 1]} : vector<32x3xf32> to vector<32x1xf32>
    %7 = vector.extract_strided_slice %5 {offsets = [0, 0], sizes = [1, 128], strides = [1, 1]} : vector<3x128xf32> to vector<1x128xf32>
    %8 = vector.broadcast %6 : vector<32x1xf32> to vector<32x128xf32>
    %9 = vector.broadcast %7 : vector<1x128xf32> to vector<32x128xf32>
    %10 = arith.mulf %8, %9 : vector<32x128xf32>
    %11 = vector.extract_strided_slice %0 {offsets = [0, 1], sizes = [32, 1], strides = [1, 1]} : vector<32x3xf32> to vector<32x1xf32>
    %12 = vector.extract_strided_slice %5 {offsets = [1, 0], sizes = [1, 128], strides = [1, 1]} : vector<3x128xf32> to vector<1x128xf32>
    %13 = vector.broadcast %11 : vector<32x1xf32> to vector<32x128xf32>
    %14 = vector.broadcast %12 : vector<1x128xf32> to vector<32x128xf32>
    %15 = arith.mulf %13, %14 : vector<32x128xf32>
    %16 = arith.addf %10, %15 : vector<32x128xf32>
    %17 = vector.extract_strided_slice %0 {offsets = [0, 2], sizes = [32, 1], strides = [1, 1]} : vector<32x3xf32> to vector<32x1xf32>
    %18 = vector.extract_strided_slice %5 {offsets = [2, 0], sizes = [1, 128], strides = [1, 1]} : vector<3x128xf32> to vector<1x128xf32>
    %19 = vector.broadcast %17 : vector<32x1xf32> to vector<32x128xf32>
    %20 = vector.broadcast %18 : vector<1x128xf32> to vector<32x128xf32>
    %21 = arith.mulf %19, %20 : vector<32x128xf32>
    %22 = arith.addf %16, %21 : vector<32x128xf32>
    %23 = vector.broadcast %1 : vector<32x1xf32> to vector<32x128xf32>
    %24 = arith.addf %22, %23 : vector<32x128xf32>
    %cst = arith.constant 0.000000e+00 : f32
    %25 = vector.broadcast %cst : f32 to vector<32x128xf32>
    %26 = arith.maximumf %24, %25 : vector<32x128xf32>
    %27 = arith.truncf %26 : vector<32x128xf32> to vector<32x128xbf16>
    %cst_10 = arith.constant dense<0.000000e+00> : vector<32x128xf32>
    %28 = tpu.matmul %2, %27, %cst_10 {dimension_numbers = #tpu.dot_dimension_numbers<[1], [0], [0], [1], [0, 0, 1, 1], [], []>} : vector<32x32xbf16>, vector<32x128xbf16>, vector<32x128xf32> -> vector<32x128xf32>
    %29 = vector.broadcast %3 : vector<32x1xf32> to vector<32x128xf32>
    %30 = arith.addf %28, %29 : vector<32x128xf32>
    %c0_11 = arith.constant 0 : index
    %c0_12 = arith.constant 0 : index
    %c0_13 = arith.constant 0 : index
    %31 = vector.load %arg7[%c0_11, %c0_12, %c0_13] : memref<2x32x128xf32, #tpu.memory_space<vmem>>, vector<1x32x128xf32>
    %32 = vector.shape_cast %31 : vector<1x32x128xf32> to vector<32x128xf32>
    %33 = vector.shape_cast %30 : vector<32x128xf32> to vector<1x32x128xf32>
    tpu.vector_store %arg7[%c0_11, %c0_12, %c0_13], %33 {strides = array<i32>} : memref<2x32x128xf32, #tpu.memory_space<vmem>>, vector<1x32x128xf32>,
    %c1 = arith.constant 1 : index
    %c0_14 = arith.constant 0 : index
    %c0_15 = arith.constant 0 : index
    %34 = vector.load %arg2[%c1, %c0_14, %c0_15] : memref<2x3x128xf32, #tpu.memory_space<vmem>>, vector<1x3x128xf32>
    %35 = vector.shape_cast %34 : vector<1x3x128xf32> to vector<3x128xf32>
    %36 = vector.extract_strided_slice %0 {offsets = [0, 0], sizes = [32, 1], strides = [1, 1]} : vector<32x3xf32> to vector<32x1xf32>
    %37 = vector.extract_strided_slice %35 {offsets = [0, 0], sizes = [1, 128], strides = [1, 1]} : vector<3x128xf32> to vector<1x128xf32>
    %38 = vector.broadcast %36 : vector<32x1xf32> to vector<32x128xf32>
    %39 = vector.broadcast %37 : vector<1x128xf32> to vector<32x128xf32>
    %40 = arith.mulf %38, %39 : vector<32x128xf32>
    %41 = vector.extract_strided_slice %0 {offsets = [0, 1], sizes = [32, 1], strides = [1, 1]} : vector<32x3xf32> to vector<32x1xf32>
    %42 = vector.extract_strided_slice %35 {offsets = [1, 0], sizes = [1, 128], strides = [1, 1]} : vector<3x128xf32> to vector<1x128xf32>
    %43 = vector.broadcast %41 : vector<32x1xf32> to vector<32x128xf32>
    %44 = vector.broadcast %42 : vector<1x128xf32> to vector<32x128xf32>
    %45 = arith.mulf %43, %44 : vector<32x128xf32>
    %46 = arith.addf %40, %45 : vector<32x128xf32>
    %47 = vector.extract_strided_slice %0 {offsets = [0, 2], sizes = [32, 1], strides = [1, 1]} : vector<32x3xf32> to vector<32x1xf32>
    %48 = vector.extract_strided_slice %35 {offsets = [2, 0], sizes = [1, 128], strides = [1, 1]} : vector<3x128xf32> to vector<1x128xf32>
    %49 = vector.broadcast %47 : vector<32x1xf32> to vector<32x128xf32>
    %50 = vector.broadcast %48 : vector<1x128xf32> to vector<32x128xf32>
    %51 = arith.mulf %49, %50 : vector<32x128xf32>
    %52 = arith.addf %46, %51 : vector<32x128xf32>
    %53 = vector.broadcast %1 : vector<32x1xf32> to vector<32x128xf32>
    %54 = arith.addf %52, %53 : vector<32x128xf32>
    %cst_16 = arith.constant 0.000000e+00 : f32
    %55 = vector.broadcast %cst_16 : f32 to vector<32x128xf32>
    %56 = arith.maximumf %54, %55 : vector<32x128xf32>
    %57 = arith.truncf %56 : vector<32x128xf32> to vector<32x128xbf16>
    %cst_17 = arith.constant dense<0.000000e+00> : vector<32x128xf32>
    %58 = tpu.matmul %2, %57, %cst_17 {dimension_numbers = #tpu.dot_dimension_numbers<[1], [0], [0], [1], [0, 0, 1, 1], [], []>} : vector<32x32xbf16>, vector<32x128xbf16>, vector<32x128xf32> -> vector<32x128xf32>
    %59 = vector.broadcast %3 : vector<32x1xf32> to vector<32x128xf32>
    %60 = arith.addf %58, %59 : vector<32x128xf32>
    %c1_18 = arith.constant 1 : index
    %c0_19 = arith.constant 0 : index
    %c0_20 = arith.constant 0 : index
    %61 = vector.load %arg7[%c1_18, %c0_19, %c0_20] : memref<2x32x128xf32, #tpu.memory_space<vmem>>, vector<1x32x128xf32>
    %62 = vector.shape_cast %61 : vector<1x32x128xf32> to vector<32x128xf32>
    %63 = vector.shape_cast %60 : vector<32x128xf32> to vector<1x32x128xf32>
    tpu.vector_store %arg7[%c1_18, %c0_19, %c0_20], %63 {strides = array<i32>} : memref<2x32x128xf32, #tpu.memory_space<vmem>>, vector<1x32x128xf32>,
    return
  }
  func.func @transform_0(%arg0: i32, %arg1: i32) -> (i32, i32, i32) {
    %c0_i32 = arith.constant 0 : i32
    %c0_i32_0 = arith.constant 0 : i32
    return %arg0, %c0_i32, %arg1 : i32, i32, i32
  }
  func.func @transform_1(%arg0: i32, %arg1: i32) -> (i32, i32) {
    %c0_i32 = arith.constant 0 : i32
    %c0_i32_0 = arith.constant 0 : i32
    %c0_i32_1 = arith.constant 0 : i32
    return %c0_i32, %c0_i32_0 : i32, i32
  }
  func.func @transform_2(%arg0: i32, %arg1: i32) -> (i32, i32) {
    %c0_i32 = arith.constant 0 : i32
    %c0_i32_0 = arith.constant 0 : i32
    %c0_i32_1 = arith.constant 0 : i32
    return %c0_i32, %c0_i32_0 : i32, i32
  }
  func.func @transform_3(%arg0: i32, %arg1: i32) -> (i32, i32) {
    %c0_i32 = arith.constant 0 : i32
    %c0_i32_0 = arith.constant 0 : i32
    %c0_i32_1 = arith.constant 0 : i32
    return %c0_i32, %c0_i32_0 : i32, i32
  }
  func.func @transform_4(%arg0: i32, %arg1: i32) -> (i32, i32) {
    %c0_i32 = arith.constant 0 : i32
    %c0_i32_0 = arith.constant 0 : i32
    %c0_i32_1 = arith.constant 0 : i32
    return %c0_i32, %c0_i32_0 : i32, i32
  }
  func.func @transform_5(%arg0: i32, %arg1: i32) -> (i32, i32, i32) {
    %c0_i32 = arith.constant 0 : i32
    %c0_i32_0 = arith.constant 0 : i32
    return %arg0, %c0_i32, %arg1 : i32, i32, i32
  }
}

</mosaic_0001>

<llo_original>
// kernel: tpu_custom_call.1
$region0: #{tpu_custom_call.1}
  #allocation0 [shape = 'u32[]', space=smem, size = 0x4, offset = 0x4, fixed_abs, tag = 'smem constant byte address 0x4 - core index']
  #allocation1 [shape = 'u32[144,128]{1,0:T(1,128)}', space=vmem, size = 0x12000, scoped, tag = 'internal scratch']
  %s0 = inlined_call_operand.vmem [shape: f32[2,3,128], index: 0, kind: input, shape index: {}]
  %s1 = inlined_call_operand.vmem [shape: f32[32,3], index: 1, kind: input, shape index: {}]
  %s2 = inlined_call_operand.vmem [shape: f32[32,1], index: 2, kind: input, shape index: {}]
  %s3 = inlined_call_operand.vmem [shape: bf16[32,32], index: 3, kind: input, shape index: {}]
  %s4 = inlined_call_operand.vmem [shape: f32[32,1], index: 4, kind: input, shape index: {}]
  %s5 = inlined_call_operand.hbm [shape: f32[2,32,128], index: 5, kind: output, shape index: {}]
  %s6 = sld [smem:[#allocation0]]
  $region30: #{tpu_custom_call.1} parent=0
    _
  %s8 = ssub.s32 1, %s6
  %s9 = scalar_select 0, %s8, %s6
  $region1: #{tpu_custom_call.1} parent=0
    #allocation2 [shape = 'u8[32768]{0}', space=vmem, size = 0x8000, scoped, tag = 'output window, operand 0, single buffered']
    #allocation3 [shape = 's32[1]{0}', space=sflag, size = 0x4, scoped, tag = 'scoped memory for tpu_custom_call.1']
    %10 = vsyncpa [#allocation3], 0
    // Predicated region
    $region2: #{tpu_custom_call.1} parent=1 // pred_check
      _
    $region3: #{tpu_custom_call.1} parent=1 // pred_check_branch
      %12 = sbr.rel (0) target = $region5
    $region4: #{tpu_custom_call.1} parent=1 // pred_region
      _
    $region5: #{tpu_custom_call.1} parent=1 // pred_fallthru
      _
    // Predicated region
    $region6: #{tpu_custom_call.1} parent=1 // pred_check
      _
    $region7: #{tpu_custom_call.1} parent=1 // pred_check_branch
      %14 = sbr.rel (0) target = $region9
    $region8: #{tpu_custom_call.1} parent=1 // pred_region
      _
    $region9: #{tpu_custom_call.1} parent=1 // pred_fallthru
      _
    // Predicated region
    $region10: #{tpu_custom_call.1} parent=1 // pred_check
      _
    $region11: #{tpu_custom_call.1} parent=1 // pred_check_branch
      %16 = sbr.rel (0) target = $region13
    $region12: #{tpu_custom_call.1} parent=1 // pred_region
      _
    $region13: #{tpu_custom_call.1} parent=1 // pred_fallthru
      _
    // Predicated region
    $region14: #{tpu_custom_call.1} parent=1 // pred_check
      _
    $region15: #{tpu_custom_call.1} parent=1 // pred_check_branch
      %18 = sbr.rel (0) target = $region17
    $region16: #{tpu_custom_call.1} parent=1 // pred_region
      _
    $region17: #{tpu_custom_call.1} parent=1 // pred_fallthru
      _
    // Predicated region
    $region18: #{tpu_custom_call.1} parent=1 // pred_check
      _
    $region19: #{tpu_custom_call.1} parent=1 // pred_check_branch
      %20 = sbr.rel (0) target = $region21
    $region20: #{tpu_custom_call.1} parent=1 // pred_region
      _
    $region21: #{tpu_custom_call.1} parent=1 // pred_fallthru
      _
    %v22 = vld [vmem:[%s1] sm:$0xff]
    %v23 = vld [vmem:[%s1 + $0x8] sm:$0xff]
    %v24 = vld [vmem:[%s1 + $0x10] sm:$0xff]
    %v25 = vld [vmem:[%s1 + $0x18] sm:$0xff]
    %v26 = vld [vmem:[%s2] sm:$0xff]
    %v27 = vld [vmem:[%s2 + $0x8] sm:$0xff]
    %v28 = vld [vmem:[%s2 + $0x10] sm:$0xff]
    %v29 = vld [vmem:[%s2 + $0x18] sm:$0xff]
    %v30 = vld [vmem:[%s3] sm:$0xf]
    %v31 = vld [vmem:[%s3 + $0x4] sm:$0xf]
    %v32 = vld [vmem:[%s3 + $0x8] sm:$0xf]
    %v33 = vld [vmem:[%s3 + $0xc] sm:$0xf]
    %v34 = vld [vmem:[%s4] sm:$0xff]
    %v35 = vld [vmem:[%s4 + $0x8] sm:$0xff]
    %v36 = vld [vmem:[%s4 + $0x10] sm:$0xff]
    %v37 = vld [vmem:[%s4 + $0x18] sm:$0xff]
    %v38 = vld [vmem:[%s0] sm:$0x7]
    %40 = vset.pattern.permute.xlu0 0
    %41 = vperm.xlu0 %40, %v22
    %v42 = vpop.permute.xlu0 %41
    %45 = vset.pattern.permute.xlu0 0
    %46 = vperm.xlu0 %45, %v23
    %v47 = vpop.permute.xlu0 %46
    %50 = vset.pattern.permute.xlu0 0
    %51 = vperm.xlu0 %50, %v24
    %v52 = vpop.permute.xlu0 %51
    %55 = vset.pattern.permute.xlu0 0
    %56 = vperm.xlu0 %55, %v25
    %v57 = vpop.permute.xlu0 %56
    %v59 = vlaneseq
    %v60 = vshrl.u32 %v59, 7
    %v61 = vsub.s32 0, %v60
    %v62 = vrot.slane %v38, %v61
    %v63 = vmul.f32 %v42, %v62
    %v64 = vmul.f32 %v47, %v62
    %v65 = vmul.f32 %v52, %v62
    %v66 = vmul.f32 %v57, %v62
    %67 = vset.pattern.permute.xlu0 1
    %68 = vperm.xlu0 %67, %v22
    %v69 = vpop.permute.xlu0 %68
    %71 = vset.pattern.permute.xlu0 1
    %72 = vperm.xlu0 %71, %v23
    %v73 = vpop.permute.xlu0 %72
    %75 = vset.pattern.permute.xlu0 1
    %76 = vperm.xlu0 %75, %v24
    %v77 = vpop.permute.xlu0 %76
    %79 = vset.pattern.permute.xlu0 1
    %80 = vperm.xlu0 %79, %v25
    %v81 = vpop.permute.xlu0 %80
    %v83 = vlaneseq
    %v84 = vshrl.u32 %v83, 7
    %v85 = vsub.s32 1, %v84
    %v86 = vrot.slane %v38, %v85
    %v87 = vmul.f32 %v69, %v86
    %v88 = vmul.f32 %v73, %v86
    %v89 = vmul.f32 %v77, %v86
    %v90 = vmul.f32 %v81, %v86
    %v91 = vadd.f32 %v63, %v87
    %v92 = vadd.f32 %v64, %v88
    %v93 = vadd.f32 %v65, %v89
    %v94 = vadd.f32 %v66, %v90
    %95 = vset.pattern.permute.xlu0 2
    %96 = vperm.xlu0 %95, %v22
    %v97 = vpop.permute.xlu0 %96
    %99 = vset.pattern.permute.xlu0 2
    %100 = vperm.xlu0 %99, %v23
    %v101 = vpop.permute.xlu0 %100
    %103 = vset.pattern.permute.xlu0 2
    %104 = vperm.xlu0 %103, %v24
    %v105 = vpop.permute.xlu0 %104
    %107 = vset.pattern.permute.xlu0 2
    %108 = vperm.xlu0 %107, %v25
    %v109 = vpop.permute.xlu0 %108
    %v111 = vlaneseq
    %v112 = vshrl.u32 %v111, 7
    %v113 = vsub.s32 2, %v112
    %v114 = vrot.slane %v38, %v113
    %v115 = vmul.f32 %v97, %v114
    %v116 = vmul.f32 %v101, %v114
    %v117 = vmul.f32 %v105, %v114
    %v118 = vmul.f32 %v109, %v114
    %v119 = vadd.f32 %v91, %v115
    %v120 = vadd.f32 %v92, %v116
    %v121 = vadd.f32 %v93, %v117
    %v122 = vadd.f32 %v94, %v118
    %124 = vset.pattern.permute.xlu0 0
    %125 = vperm.xlu0 %124, %v26
    %v126 = vpop.permute.xlu0 %125
    %129 = vset.pattern.permute.xlu0 0
    %130 = vperm.xlu0 %129, %v27
    %v131 = vpop.permute.xlu0 %130
    %134 = vset.pattern.permute.xlu0 0
    %135 = vperm.xlu0 %134, %v28
    %v136 = vpop.permute.xlu0 %135
    %139 = vset.pattern.permute.xlu0 0
    %140 = vperm.xlu0 %139, %v29
    %v141 = vpop.permute.xlu0 %140
    %v143 = vadd.f32 %v119, %v126
    %v144 = vadd.f32 %v120, %v131
    %v145 = vadd.f32 %v121, %v136
    %v146 = vadd.f32 %v122, %v141
    %v147 = vmax.f32 %v143, 0.0
    %v148 = vmax.f32 %v144, 0.0
    %v149 = vmax.f32 %v145, 0.0
    %v150 = vmax.f32 %v146, 0.0
    %v151 = vpack.c.bf16 %v148, %v147
    %v152 = vpack.c.bf16 %v150, %v149
    %154 = vset.pattern.permute.xlu0 0
    %155 = vperm.xlu0 %154, %v34
    %v156 = vpop.permute.xlu0 %155
    %159 = vset.pattern.permute.xlu0 0
    %160 = vperm.xlu0 %159, %v35
    %v161 = vpop.permute.xlu0 %160
    %164 = vset.pattern.permute.xlu0 0
    %165 = vperm.xlu0 %164, %v36
    %v166 = vpop.permute.xlu0 %165
    %169 = vset.pattern.permute.xlu0 0
    %170 = vperm.xlu0 %169, %v37
    %v171 = vpop.permute.xlu0 %170
    %v177 = vunpack.c.l.b16 %v30
    %v178 = vunpack.c.l.b16 %v31
    %v179 = vunpack.c.l.b16 %v32
    %v180 = vunpack.c.l.b16 %v33
    %v181 = vpack.c.b16 %v178, %v177
    %v182 = vpack.c.b16 %v180, %v179
    %vm183 = vcmask 261120
    %v185 = vsel %vm183, %v181, 0
    %v188 = vsel %vm183, %v182, 0
    %190 = vmatprep.subr.bf16.mxu0 0
    %191 = vmatpush1.bf16.msra.mxu0 0
    %192 = vmatprep.subr.bf16.mxu0 0
    %193 = vmatpush1.bf16.msra.mxu0 0
    %194 = vmatprep.subr.bf16.mxu0 0
    %195 = vmatpush1.bf16.msra.mxu0 0
    %196 = vmatprep.subr.bf16.mxu0 0
    %197 = vmatpush1.bf16.msra.mxu0 0
    %198 = vmatprep.subr.bf16.mxu0 0
    %199 = vmatpush1.bf16.msra.mxu0 0
    %200 = vmatprep.subr.bf16.mxu0 0
    %201 = vmatpush1.bf16.msra.mxu0 0
    %202 = vmatprep.subr.bf16.mxu0 0
    %203 = vmatpush1.bf16.msra.mxu0 %v152
    %204 = vmatprep.subr.bf16.mxu0 0
    %205 = vmatpush1.bf16.msra.mxu0 %v151
    %206 = vmatprep.subr.bf16.mxu0 0
    %207 = vmatpush2.bf16.msra.mxu0 0
    %208 = vmatprep.subr.bf16.mxu0 0
    %209 = vmatpush2.bf16.msra.mxu0 0
    %210 = vmatprep.subr.bf16.mxu0 0
    %211 = vmatpush2.bf16.msra.mxu0 0
    %212 = vmatprep.subr.bf16.mxu0 0
    %213 = vmatpush2.bf16.msra.mxu0 0
    %214 = vmatprep.subr.bf16.mxu0 0
    %215 = vmatpush2.bf16.msra.mxu0 0
    %216 = vmatprep.subr.bf16.mxu0 0
    %217 = vmatpush2.bf16.msra.mxu0 0
    %218 = vmatprep.subr.bf16.mxu0 0
    %219 = vmatpush2.bf16.msra.mxu0 0
    %220 = vmatprep.subr.bf16.mxu0 0
    %221 = vmatpush2.bf16.msra.mxu0 0
    %222 = vmatprep.mubr.bf16.mxu0 0
    %223 = vmatmul.mubr.bf16.gmra.mxu0 %v185
    %v224 = vpop.f32.mrf.mxu0
    %v225 = vadd.f32 %v156, %v224
    %v226 = vpop.f32.mrf.mxu0
    %v227 = vpop.f32.mrf.mxu0
    %v228 = vadd.f32 %v161, %v227
    %v229 = vpop.f32.mrf.mxu0
    %230 = vmatprep.mubr.bf16.mxu0 0
    %231 = vmatmul.mubr.bf16.gmra.mxu0 %v188
    %v232 = vpop.f32.mrf.mxu0
    %v233 = vadd.f32 %v166, %v232
    %v234 = vpop.f32.mrf.mxu0
    %v235 = vpop.f32.mrf.mxu0
    %v236 = vadd.f32 %v171, %v235
    %v237 = vpop.f32.mrf.mxu0
    %238 = vdwg.mxu0
    %239 = vst [vmem:[#allocation2] sm:$0xff] %v225
    %240 = vst [vmem:[#allocation2 + $0x8] sm:$0xff] %v228
    %241 = vst [vmem:[#allocation2 + $0x10] sm:$0xff] %v233
    %242 = vst [vmem:[#allocation2 + $0x18] sm:$0xff] %v236
    %s243 = scalar_lea.vmem %s0, 4
    %v244 = vld [vmem:[%s243] sm:$0x7]
    %v245 = vlaneseq
    %v246 = vshrl.u32 %v245, 7
    %v247 = vsub.s32 0, %v246
    %v248 = vrot.slane %v244, %v247
    %v249 = vmul.f32 %v42, %v248
    %v250 = vmul.f32 %v47, %v248
    %v251 = vmul.f32 %v52, %v248
    %v252 = vmul.f32 %v57, %v248
    %v253 = vlaneseq
    %v254 = vshrl.u32 %v253, 7
    %v255 = vsub.s32 1, %v254
    %v256 = vrot.slane %v244, %v255
    %v257 = vmul.f32 %v69, %v256
    %v258 = vmul.f32 %v73, %v256
    %v259 = vmul.f32 %v77, %v256
    %v260 = vmul.f32 %v81, %v256
    %v261 = vadd.f32 %v249, %v257
    %v262 = vadd.f32 %v250, %v258
    %v263 = vadd.f32 %v251, %v259
    %v264 = vadd.f32 %v252, %v260
    %v265 = vlaneseq
    %v266 = vshrl.u32 %v265, 7
    %v267 = vsub.s32 2, %v266
    %v268 = vrot.slane %v244, %v267
    %v269 = vmul.f32 %v97, %v268
    %v270 = vmul.f32 %v101, %v268
    %v271 = vmul.f32 %v105, %v268
    %v272 = vmul.f32 %v109, %v268
    %v273 = vadd.f32 %v261, %v269
    %v274 = vadd.f32 %v262, %v270
    %v275 = vadd.f32 %v263, %v271
    %v276 = vadd.f32 %v264, %v272
    %v277 = vadd.f32 %v273, %v126
    %v278 = vadd.f32 %v274, %v131
    %v279 = vadd.f32 %v275, %v136
    %v280 = vadd.f32 %v276, %v141
    %v281 = vmax.f32 %v277, 0.0
    %v282 = vmax.f32 %v278, 0.0
    %v283 = vmax.f32 %v279, 0.0
    %v284 = vmax.f32 %v280, 0.0
    %v285 = vpack.c.bf16 %v282, %v281
    %v286 = vpack.c.bf16 %v284, %v283
    %287 = vmatprep.subr.bf16.mxu0 0
    %288 = vmatpush1.bf16.msra.mxu0 0
    %289 = vmatprep.subr.bf16.mxu0 0
    %290 = vmatpush1.bf16.msra.mxu0 0
    %291 = vmatprep.subr.bf16.mxu0 0
    %292 = vmatpush1.bf16.msra.mxu0 0
    %293 = vmatprep.subr.bf16.mxu0 0
    %294 = vmatpush1.bf16.msra.mxu0 0
    %295 = vmatprep.subr.bf16.mxu0 0
    %296 = vmatpush1.bf16.msra.mxu0 0
    %297 = vmatprep.subr.bf16.mxu0 0
    %298 = vmatpush1.bf16.msra.mxu0 0
    %299 = vmatprep.subr.bf16.mxu0 0
    %300 = vmatpush1.bf16.msra.mxu0 %v286
    %301 = vmatprep.subr.bf16.mxu0 0
    %302 = vmatpush1.bf16.msra.mxu0 %v285
    %303 = vmatprep.subr.bf16.mxu0 0
    %304 = vmatpush2.bf16.msra.mxu0 0
    %305 = vmatprep.subr.bf16.mxu0 0
    %306 = vmatpush2.bf16.msra.mxu0 0
    %307 = vmatprep.subr.bf16.mxu0 0
    %308 = vmatpush2.bf16.msra.mxu0 0
    %309 = vmatprep.subr.bf16.mxu0 0
    %310 = vmatpush2.bf16.msra.mxu0 0
    %311 = vmatprep.subr.bf16.mxu0 0
    %312 = vmatpush2.bf16.msra.mxu0 0
    %313 = vmatprep.subr.bf16.mxu0 0
    %314 = vmatpush2.bf16.msra.mxu0 0
    %315 = vmatprep.subr.bf16.mxu0 0
    %316 = vmatpush2.bf16.msra.mxu0 0
    %317 = vmatprep.subr.bf16.mxu0 0
    %318 = vmatpush2.bf16.msra.mxu0 0
    %319 = vmatprep.mubr.bf16.mxu0 0
    %320 = vmatmul.mubr.bf16.gmra.mxu0 %v185
    %v321 = vpop.f32.mrf.mxu0
    %v322 = vadd.f32 %v156, %v321
    %v323 = vpop.f32.mrf.mxu0
    %v324 = vpop.f32.mrf.mxu0
    %v325 = vadd.f32 %v161, %v324
    %v326 = vpop.f32.mrf.mxu0
    %327 = vmatprep.mubr.bf16.mxu0 0
    %328 = vmatmul.mubr.bf16.gmra.mxu0 %v188
    %v329 = vpop.f32.mrf.mxu0
    %v330 = vadd.f32 %v166, %v329
    %v331 = vpop.f32.mrf.mxu0
    %v332 = vpop.f32.mrf.mxu0
    %v333 = vadd.f32 %v171, %v332
    %v334 = vpop.f32.mrf.mxu0
    %335 = vdwg.mxu0
    %s336 = scalar_lea.vmem [#allocation2], 32
    %337 = vst [vmem:[%s336] sm:$0xff] %v322
    %338 = vst [vmem:[%s336 + $0x8] sm:$0xff] %v325
    %339 = vst [vmem:[%s336 + $0x10] sm:$0xff] %v330
    %340 = vst [vmem:[%s336 + $0x18] sm:$0xff] %v333
    // Predicated region
    $region22: #{tpu_custom_call.1} parent=1 // pred_check
      _
    $region23: #{tpu_custom_call.1} parent=1 // pred_check_branch
      %342 = sbr.rel (0) target = $region25
    $region24: #{tpu_custom_call.1} parent=1 // pred_region
      %s344 = ssub.s32 1024, 1024
      %345 = vsyncadd [#allocation3], %s344
      %s346 = sshll.u32 [#allocation2], 4
      %s347 = int_to_ptr.vmem [resolvable:$true] %s346
      %352 = dma.vmem_to_hbm [thread:$0]  %s347, 1024, %s5, [#allocation3], 128, 128, 8
    $region25: #{tpu_custom_call.1} parent=1 // pred_fallthru
      _
    // Predicated region
    $region26: #{tpu_custom_call.1} parent=1 // pred_check
      _
    $region27: #{tpu_custom_call.1} parent=1 // pred_check_branch
      %354 = sbr.rel (0) target = $region29
    $region28: #{tpu_custom_call.1} parent=1 // pred_region
      %355 = dma.done [#allocation3], 1024
    $region29: #{tpu_custom_call.1} parent=1 // pred_fallthru
      _
    %356 = vsyncpa [#allocation3], 1

</llo_original>
